<compile_context>
chip_gen: v6e
topology: v6e:2x2x1
jax: 0.10.0
libtpu: 0.0.40
codegen_flags: <defaults>
</compile_context>

<pallas_src>
import jax
import jax.numpy as jnp
from jax.experimental import pallas as pl
from jax.experimental.pallas import tpu as pltpu

_LANE = 128
_SUB = 8


def _round_up(x, m):
    return ((x + m - 1) // m) * m


def _value_mlp_kernel(x_ref, w1_ref, b1_ref, w2_ref, b2_ref, w3_ref, b3_ref, o_ref):
    # Cast the streamed f32 state tile to the MXU compute dtype *in-kernel*
    # (avoids a separate wrapper-side astype pass over HBM).
    x = x_ref[...].astype(w1_ref.dtype)
    # h1 = tanh(x @ W1 + b1)   (bf16 MXU inputs, f32 accumulation / bias / tanh)
    h1 = jnp.tanh(
        jnp.dot(x, w1_ref[...], preferred_element_type=jnp.float32) + b1_ref[...]
    )
    # h2 = tanh(h1 @ W2 + b2)
    h2 = jnp.tanh(
        jnp.dot(h1.astype(w2_ref.dtype), w2_ref[...],
                preferred_element_type=jnp.float32) + b2_ref[...]
    )
    # Final head, lane-dense: W3_rep(8,H) @ h2(TB,H)^T -> (8,TB) on the MXU
    # (standard NT contraction, like Q @ K^T); row 0 is the value row.  This
    # keeps the output block a fully lane-dense (1, TB) row instead of a
    # (TB, 1) column that would occupy 1 of 128 lanes with masked stores.
    out8 = jax.lax.dot_general(
        w3_ref[...], h2,
        dimension_numbers=(((1,), (1,)), ((), ())),
        preferred_element_type=jnp.float32)
    o_ref[...] = out8[0:1, :] + b3_ref[0, 0]


def value_forward(state, w1, b1, w2, b2, w3, b3, *,
                  block_b=8192, compute_dtype=jnp.bfloat16):
    """Pallas forward of Value.  state: (B, D) f32 -> (B,) f32 (squeezed)."""
    B, D = state.shape
    H = w1.shape[1]
    assert w1.shape == (D, H) and w2.shape == (H, H)

    # ---- parameter prep (tiny, one-time ops) --------------------------------
    w1c = jnp.asarray(w1).astype(compute_dtype)
    w2c = jnp.asarray(w2).astype(compute_dtype)
    b1c = jnp.asarray(b1, jnp.float32).reshape(1, H)
    b2c = jnp.asarray(b2, jnp.float32).reshape(1, H)
    # Accept w3 as (H, 1) (nn.Linear style, pre-transposed) or (1, H); keep f32
    # and replicate to 8 sublanes so the head NT matmul has a full-tile LHS.
    w3c = jnp.tile(jnp.asarray(w3, jnp.float32).reshape(1, H), (8, 1))
    b3c = jnp.asarray(b3, jnp.float32).reshape(1, 1)

    # ---- generation-aware VMEM budget ---------------------------------------
    try:
        phys_vmem = int(pltpu.get_tpu_info().vmem_capacity_bytes)
    except Exception:
        phys_vmem = 64 * 1024 * 1024            # conservative fallback (v7x)
    budget = (phys_vmem * 3) // 4               # headroom for Mosaic internal scratch

    # ---- batch-tile selection -----------------------------------------------
    # Big tiles amortize per-grid-step overhead (dominant at these tiny D/H),
    # but keep >= 2 tiles for realistic batches so the "parallel" batch axis
    # can shard across the two TensorCores on v7x.
    half_b = _round_up(pl.cdiv(B, 2), _SUB)
    TB = min(int(block_b), half_b, _round_up(B, _SUB))
    TB = max(_SUB, (TB // _SUB) * _SUB)
    if TB >= _LANE:
        TB = _round_up(TB, _LANE)               # unmasked, lane-dense output stores

    d_l = _round_up(D, _LANE)
    h_l = _round_up(H, _LANE)

    def _vmem_bytes(tb):
        # Lane/sublane-padding-aware estimate (VMEM blocks pad last dim to 128,
        # second-to-last to the sublane granule).
        tb_l = _round_up(tb, _LANE)
        x_buf = 2 * tb * d_l * 4                              # dbl-buffered f32 state tile
        o_buf = 2 * _SUB * tb_l * 4                           # dbl-buffered (1,TB) f32 row
        w_buf = 2 * ((_round_up(D, 16) + _round_up(H, 16)) * h_l * 2   # bf16 W1, W2
                     + 3 * _SUB * h_l * 4)                             # f32 b1, b2, W3 rows
        inter = (tb * d_l * 2                                 # bf16 state copy
                 + 3 * tb * h_l * 4 + tb * h_l * 2            # f32/bf16 h1, h2, temps
                 + _SUB * tb_l * 4)                           # (8, TB) head result
        return x_buf + o_buf + w_buf + inter

    while TB > _SUB and _vmem_bytes(TB) > budget:
        TB = max(_SUB, ((TB // 2) // _SUB) * _SUB)

    vmem_limit = int(min(budget, max(2 * _vmem_bytes(TB), 32 * 1024 * 1024)))

    num_tiles = pl.cdiv(B, TB)
    # No explicit pad of `state`: the last (ragged) input tile reads whatever
    # lies past the batch; those rows stay finite through tanh and their
    # outputs are discarded by the [:B] slice below.

    out = pl.pallas_call(
        _value_mlp_kernel,
        out_shape=jax.ShapeDtypeStruct((num_tiles, TB), jnp.float32),
        grid_spec=pltpu.PrefetchScalarGridSpec(
            num_scalar_prefetch=0,
            grid=(num_tiles,),
            in_specs=[
                pl.BlockSpec((TB, D), lambda i: (i, 0)),   # state tile (streamed, f32)
                pl.BlockSpec((D, H), lambda i: (0, 0)),    # W1 (resident, bf16)
                pl.BlockSpec((1, H), lambda i: (0, 0)),    # b1 (f32)
                pl.BlockSpec((H, H), lambda i: (0, 0)),    # W2 (resident, bf16)
                pl.BlockSpec((1, H), lambda i: (0, 0)),    # b2 (f32)
                pl.BlockSpec((8, H), lambda i: (0, 0)),    # W3 replicated rows (f32)
                pl.BlockSpec(memory_space=pltpu.MemorySpace.SMEM),  # b3 scalar
            ],
            out_specs=pl.BlockSpec((1, TB), lambda i: (i, 0)),      # lane-dense row
        ),
        compiler_params=pltpu.CompilerParams(
            dimension_semantics=("parallel",),
            vmem_limit_bytes=vmem_limit,
        ),
    )(state, w1c, b1c, w2c, b2c, w3c, b3c)

    out = out.reshape(num_tiles * TB)[:B]
    # torch .squeeze(): (B, 1) -> (B,)  (and a B == 1 batch collapses to a scalar)
    return jnp.squeeze(out)


def make_params(key, state_dim, hidden):
    """Deterministic synthetic MLP parameters (nn.Linear shapes, pre-transposed)."""
    k1, k2, k3, k4, k5, k6 = jax.random.split(key, 6)
    w1 = jax.random.normal(k1, (state_dim, hidden), jnp.float32) * 0.1
    b1 = jax.random.normal(k2, (1, hidden), jnp.float32) * 0.1
    w2 = jax.random.normal(k3, (hidden, hidden), jnp.float32) * 0.1
    b2 = jax.random.normal(k4, (1, hidden), jnp.float32) * 0.1
    w3 = jax.random.normal(k5, (hidden, 1), jnp.float32) * 0.1
    b3 = jax.random.normal(k6, (1, 1), jnp.float32) * 0.1
    return w1, b1, w2, b2, w3, b3


def value_reference(state, w1, b1, w2, b2, w3, b3):
    h1 = jnp.tanh(state @ w1 + b1)
    h2 = jnp.tanh(h1 @ w2 + b2)
    return jnp.squeeze(h2 @ w3 + b3)


if __name__ == "__main__":
    key = jax.random.PRNGKey(0)
    k_x1, k_x2, k_x3, k_p = jax.random.split(key, 4)

    D, H = 32, 64  # state_dim, hidden
    params = make_params(k_p, D, H)

    # Case 1: small batch, single tile.
    B1 = 8
    s1 = jax.random.normal(k_x1, (B1, D), jnp.float32)
    out1 = jax.block_until_ready(value_forward(s1, *params))
    ref1 = value_reference(s1, *params)
    assert out1.shape == (B1,), out1.shape
    assert jnp.allclose(out1, ref1, atol=2e-2, rtol=2e-2), (out1, ref1)

    # Case 2: ragged batch, forced small tile (multi-tile pipelining + unpadded tail).
    B2 = 200
    s2 = jax.random.normal(k_x2, (B2, D), jnp.float32)
    out2 = jax.block_until_ready(value_forward(s2, *params, block_b=64))
    ref2 = value_reference(s2, *params)
    assert out2.shape == (B2,), out2.shape
    assert jnp.allclose(out2, ref2, atol=2e-2, rtol=2e-2)

    # Case 3: default large-tile path (2 tiles -> v7x megacore sharding, ragged tail).
    B3 = 5000
    s3 = jax.random.normal(k_x3, (B3, D), jnp.float32)
    out3 = jax.block_until_ready(value_forward(s3, *params))
    ref3 = value_reference(s3, *params)
    assert out3.shape == (B3,), out3.shape
    assert jnp.allclose(out3, ref3, atol=2e-2, rtol=2e-2)

    print("KERNEL_OK")
</pallas_src>

<mosaic_0001>
module attributes {stable_mosaic.version = 11 : i64} {
  func.func @_value_mlp_kernel(%arg0: i32, %arg1: memref<8x32xf32, #tpu.memory_space<vmem>>, %arg2: memref<32x64xbf16, #tpu.memory_space<vmem>>, %arg3: memref<1x64xf32, #tpu.memory_space<vmem>>, %arg4: memref<64x64xbf16, #tpu.memory_space<vmem>>, %arg5: memref<1x64xf32, #tpu.memory_space<vmem>>, %arg6: memref<8x64xf32, #tpu.memory_space<vmem>>, %arg7: memref<1x1xf32, #tpu.memory_space<smem>>, %arg8: memref<1x8xf32, #tpu.memory_space<vmem>>) attributes {dimension_semantics = [#tpu.dimension_semantics<parallel>], iteration_bounds = array<i64: 1>, scalar_prefetch = 0 : i64, scratch_operands = 0 : i64, tpu.core_type = #tpu.core_type<tc>, window_params = [{transform_indices = @transform_0, window_bounds = array<i64: 8, 32>}, {pipeline_mode = #tpu.pipeline_mode<synchronous>, transform_indices = @transform_1, window_bounds = array<i64: 32, 64>}, {pipeline_mode = #tpu.pipeline_mode<synchronous>, transform_indices = @transform_2, window_bounds = array<i64: 1, 64>}, {pipeline_mode = #tpu.pipeline_mode<synchronous>, transform_indices = @transform_3, window_bounds = array<i64: 64, 64>}, {pipeline_mode = #tpu.pipeline_mode<synchronous>, transform_indices = @transform_4, window_bounds = array<i64: 1, 64>}, {pipeline_mode = #tpu.pipeline_mode<synchronous>, transform_indices = @transform_5, window_bounds = array<i64: 8, 64>}, {transform_indices = @transform_6, window_bounds = array<i64: 1, 1>}, {transform_indices = @transform_7, window_bounds = array<i64: 1, 8>}]} {
    %c0 = arith.constant 0 : index
    %c0_0 = arith.constant 0 : index
    %0 = vector.load %arg1[%c0, %c0_0] : memref<8x32xf32, #tpu.memory_space<vmem>>, vector<8x32xf32>
    %1 = arith.truncf %0 : vector<8x32xf32> to vector<8x32xbf16>
    %c0_1 = arith.constant 0 : index
    %c0_2 = arith.constant 0 : index
    %2 = vector.load %arg2[%c0_1, %c0_2] : memref<32x64xbf16, #tpu.memory_space<vmem>>, vector<32x64xbf16>
    %cst = arith.constant dense<0.000000e+00> : vector<8x64xf32>
    %3 = tpu.matmul %1, %2, %cst {dimension_numbers = #tpu.dot_dimension_numbers<[1], [0], [0], [1], [0, 0, 1, 1], [], []>} : vector<8x32xbf16>, vector<32x64xbf16>, vector<8x64xf32> -> vector<8x64xf32>
    %c0_3 = arith.constant 0 : index
    %c0_4 = arith.constant 0 : index
    %4 = vector.load %arg3[%c0_3, %c0_4] : memref<1x64xf32, #tpu.memory_space<vmem>>, vector<1x64xf32>
    %5 = vector.broadcast %4 : vector<1x64xf32> to vector<8x64xf32>
    %6 = arith.addf %3, %5 : vector<8x64xf32>
    %7 = math.tanh %6 : vector<8x64xf32>
    %8 = arith.truncf %7 : vector<8x64xf32> to vector<8x64xbf16>
    %c0_5 = arith.constant 0 : index
    %c0_6 = arith.constant 0 : index
    %9 = vector.load %arg4[%c0_5, %c0_6] : memref<64x64xbf16, #tpu.memory_space<vmem>>, vector<64x64xbf16>
    %cst_7 = arith.constant dense<0.000000e+00> : vector<8x64xf32>
    %10 = tpu.matmul %8, %9, %cst_7 {dimension_numbers = #tpu.dot_dimension_numbers<[1], [0], [0], [1], [0, 0, 1, 1], [], []>} : vector<8x64xbf16>, vector<64x64xbf16>, vector<8x64xf32> -> vector<8x64xf32>
    %c0_8 = arith.constant 0 : index
    %c0_9 = arith.constant 0 : index
    %11 = vector.load %arg5[%c0_8, %c0_9] : memref<1x64xf32, #tpu.memory_space<vmem>>, vector<1x64xf32>
    %12 = vector.broadcast %11 : vector<1x64xf32> to vector<8x64xf32>
    %13 = arith.addf %10, %12 : vector<8x64xf32>
    %14 = math.tanh %13 : vector<8x64xf32>
    %c0_10 = arith.constant 0 : index
    %c0_11 = arith.constant 0 : index
    %15 = vector.load %arg6[%c0_10, %c0_11] : memref<8x64xf32, #tpu.memory_space<vmem>>, vector<8x64xf32>
    %cst_12 = arith.constant dense<0.000000e+00> : vector<8x8xf32>
    %16 = tpu.matmul %15, %14, %cst_12 {dimension_numbers = #tpu.dot_dimension_numbers<[1], [1], [0], [0], [0, 0, 1, 0], [], []>} : vector<8x64xf32>, vector<8x64xf32>, vector<8x8xf32> -> vector<8x8xf32>
    %17 = vector.extract_strided_slice %16 {offsets = [0, 0], sizes = [1, 8], strides = [1, 1]} : vector<8x8xf32> to vector<1x8xf32>
    %c0_13 = arith.constant 0 : index
    %c0_14 = arith.constant 0 : index
    %18 = memref.load %arg7[%c0_13, %c0_14] : memref<1x1xf32, #tpu.memory_space<smem>>
    %19 = vector.broadcast %18 : f32 to vector<1x8xf32>
    %20 = arith.addf %17, %19 : vector<1x8xf32>
    %c0_15 = arith.constant 0 : index
    %c0_16 = arith.constant 0 : index
    %21 = vector.load %arg8[%c0_15, %c0_16] : memref<1x8xf32, #tpu.memory_space<vmem>>, vector<1x8xf32>
    tpu.vector_store %arg8[%c0_15, %c0_16], %20 {strides = array<i32>} : memref<1x8xf32, #tpu.memory_space<vmem>>, vector<1x8xf32>,
    return
  }
  func.func @transform_0(%arg0: i32) -> (i32, i32) {
    %c0_i32 = arith.constant 0 : i32
    %c0_i32_0 = arith.constant 0 : i32
    return %arg0, %c0_i32 : i32, i32
  }
  func.func @transform_1(%arg0: i32) -> (i32, i32) {
    %c0_i32 = arith.constant 0 : i32
    %c0_i32_0 = arith.constant 0 : i32
    %c0_i32_1 = arith.constant 0 : i32
    return %c0_i32, %c0_i32_0 : i32, i32
  }
  func.func @transform_2(%arg0: i32) -> (i32, i32) {
    %c0_i32 = arith.constant 0 : i32
    %c0_i32_0 = arith.constant 0 : i32
    %c0_i32_1 = arith.constant 0 : i32
    return %c0_i32, %c0_i32_0 : i32, i32
  }
  func.func @transform_3(%arg0: i32) -> (i32, i32) {
    %c0_i32 = arith.constant 0 : i32
    %c0_i32_0 = arith.constant 0 : i32
    %c0_i32_1 = arith.constant 0 : i32
    return %c0_i32, %c0_i32_0 : i32, i32
  }
  func.func @transform_4(%arg0: i32) -> (i32, i32) {
    %c0_i32 = arith.constant 0 : i32
    %c0_i32_0 = arith.constant 0 : i32
    %c0_i32_1 = arith.constant 0 : i32
    return %c0_i32, %c0_i32_0 : i32, i32
  }
  func.func @transform_5(%arg0: i32) -> (i32, i32) {
    %c0_i32 = arith.constant 0 : i32
    %c0_i32_0 = arith.constant 0 : i32
    %c0_i32_1 = arith.constant 0 : i32
    return %c0_i32, %c0_i32_0 : i32, i32
  }
  func.func @transform_6(%arg0: i32) -> (i32, i32) {
    %c0_i32 = arith.constant 0 : i32
    %c0_i32_0 = arith.constant 0 : i32
    %c0_i32_1 = arith.constant 0 : i32
    return %c0_i32, %c0_i32_0 : i32, i32
  }
  func.func @transform_7(%arg0: i32) -> (i32, i32) {
    %c0_i32 = arith.constant 0 : i32
    %c0_i32_0 = arith.constant 0 : i32
    return %arg0, %c0_i32 : i32, i32
  }
}

</mosaic_0001>

<llo_original>
// kernel: tpu_custom_call.1
$region0: #{tpu_custom_call.1}
  #allocation0 [shape = 'u32[]', space=smem, size = 0x4, offset = 0x4, fixed_abs, tag = 'smem constant byte address 0x4 - core index']
  #allocation1 [shape = 'u32[144,128]{1,0:T(1,128)}', space=vmem, size = 0x12000, scoped, tag = 'internal scratch']
  #allocation2 [shape = 'f32[1,1]{1,0:T(1,128)S(6)}', space=smem, size = 0x200, scoped, tag = 'scoped memory for tpu_custom_call.1']
  %s0 = inlined_call_operand.hbm [shape: f32[8,32], index: 0, kind: input, shape index: {}]
  %s1 = inlined_call_operand.hbm [shape: bf16[32,64], index: 1, kind: input, shape index: {}]
  %s2 = inlined_call_operand.vmem [shape: f32[1,64], index: 2, kind: input, shape index: {}]
  %s3 = inlined_call_operand.hbm [shape: bf16[64,64], index: 3, kind: input, shape index: {}]
  %s4 = inlined_call_operand.vmem [shape: f32[1,64], index: 4, kind: input, shape index: {}]
  %s5 = inlined_call_operand.vmem [shape: f32[8,64], index: 5, kind: input, shape index: {}]
  %s6 = inlined_call_operand.<no memory space> [shape: f32[1,1], index: 6, kind: input, shape index: {}]
  %s7 = inlined_call_operand.hbm [shape: f32[1,8], index: 7, kind: output, shape index: {}]
  %s8 = sld [smem:[#allocation0]]
  $region50: #{tpu_custom_call.1} parent=0
    _
  %s10 = ssub.s32 1, %s8
  %s11 = scalar_select 0, %s10, %s8
  %12 = sst [smem:[#allocation2]] %s6
  $region1: #{tpu_custom_call.1} parent=0
    #allocation3 [shape = 'u8[4096]{0}', space=vmem, size = 0x1000, scoped, tag = 'input window, operand 0, single buffered']
    #allocation4 [shape = 's32[1]{0}', space=sflag, size = 0x4, scoped, tag = 'scoped memory for tpu_custom_call.1']
    #allocation5 [shape = 's32[1]{0}', space=sflag, size = 0x4, scoped, tag = 'scoped memory for tpu_custom_call.1']
    #allocation6 [shape = 'u8[8192]{0}', space=vmem, size = 0x2000, scoped, tag = 'input window, operand 1, single buffered']
    #allocation7 [shape = 's32[1]{0}', space=sflag, size = 0x4, scoped, tag = 'scoped memory for tpu_custom_call.1']
    #allocation8 [shape = 'u8[16384]{0}', space=vmem, size = 0x4000, scoped, tag = 'input window, operand 3, single buffered']
    #allocation9 [shape = 'u8[512]{0}', space=vmem, size = 0x400, scoped, tag = 'output window, operand 0, single buffered']
    %13 = vsyncpa [#allocation4], 0
    %14 = vsyncpa [#allocation7], 0
    %15 = vsyncpa [#allocation5], 0
    // Predicated region
    $region2: #{tpu_custom_call.1} parent=1 // pred_check
      _
    $region3: #{tpu_custom_call.1} parent=1 // pred_check_branch
      %17 = sbr.rel (0) target = $region5
    $region4: #{tpu_custom_call.1} parent=1 // pred_region
      %s19 = ssub.s32 128, 128
      %20 = vsyncadd [#allocation4], %s19
      %s22 = sshll.u32 [#allocation3], 4
      %s23 = int_to_ptr.vmem [resolvable:$true] %s22
      %25 = dma.hbm_to_vmem [thread:$0]  %s0, 128, %s23, [#allocation4]
    $region5: #{tpu_custom_call.1} parent=1 // pred_fallthru
      _
    // Predicated region
    $region6: #{tpu_custom_call.1} parent=1 // pred_check
      _
    $region7: #{tpu_custom_call.1} parent=1 // pred_check_branch
      %27 = sbr.rel (0) target = $region9
    $region8: #{tpu_custom_call.1} parent=1 // pred_region
      %s29 = ssub.s32 256, 256
      %30 = vsyncadd [#allocation7], %s29
      %s31 = sshll.u32 [#allocation6], 4
      %s32 = int_to_ptr.vmem [resolvable:$true] %s31
      %37 = dma.hbm_to_vmem [thread:$0]  %s1, 256, %s32, [#allocation7], 64, 64, 4
    $region9: #{tpu_custom_call.1} parent=1 // pred_fallthru
      _
    // Predicated region
    $region10: #{tpu_custom_call.1} parent=1 // pred_check
      _
    $region11: #{tpu_custom_call.1} parent=1 // pred_check_branch
      %39 = sbr.rel (0) target = $region13
    $region12: #{tpu_custom_call.1} parent=1 // pred_region
      _
    $region13: #{tpu_custom_call.1} parent=1 // pred_fallthru
      _
    // Predicated region
    $region14: #{tpu_custom_call.1} parent=1 // pred_check
      _
    $region15: #{tpu_custom_call.1} parent=1 // pred_check_branch
      %41 = sbr.rel (0) target = $region17
    $region16: #{tpu_custom_call.1} parent=1 // pred_region
      %s43 = ssub.s32 512, 512
      %44 = vsyncadd [#allocation7], %s43
      %s45 = sshll.u32 [#allocation8], 4
      %s46 = int_to_ptr.vmem [resolvable:$true] %s45
      %51 = dma.hbm_to_vmem [thread:$0]  %s3, 512, %s46, [#allocation7], 64, 64, 4
    $region17: #{tpu_custom_call.1} parent=1 // pred_fallthru
      _
    // Predicated region
    $region18: #{tpu_custom_call.1} parent=1 // pred_check
      _
    $region19: #{tpu_custom_call.1} parent=1 // pred_check_branch
      %53 = sbr.rel (0) target = $region21
    $region20: #{tpu_custom_call.1} parent=1 // pred_region
      _
    $region21: #{tpu_custom_call.1} parent=1 // pred_fallthru
      _
    // Predicated region
    $region22: #{tpu_custom_call.1} parent=1 // pred_check
      _
    $region23: #{tpu_custom_call.1} parent=1 // pred_check_branch
      %55 = sbr.rel (0) target = $region25
    $region24: #{tpu_custom_call.1} parent=1 // pred_region
      _
    $region25: #{tpu_custom_call.1} parent=1 // pred_fallthru
      _
    // Predicated region
    $region26: #{tpu_custom_call.1} parent=1 // pred_check
      _
    $region27: #{tpu_custom_call.1} parent=1 // pred_check_branch
      %57 = sbr.rel (0) target = $region29
    $region28: #{tpu_custom_call.1} parent=1 // pred_region
      _
    $region29: #{tpu_custom_call.1} parent=1 // pred_fallthru
      _
    // Predicated region
    $region30: #{tpu_custom_call.1} parent=1 // pred_check
      _
    $region31: #{tpu_custom_call.1} parent=1 // pred_check_branch
      %59 = sbr.rel (0) target = $region33
    $region32: #{tpu_custom_call.1} parent=1 // pred_region
      %60 = dma.done [#allocation4], 128
    $region33: #{tpu_custom_call.1} parent=1 // pred_fallthru
      _
    // Predicated region
    $region34: #{tpu_custom_call.1} parent=1 // pred_check
      _
    $region35: #{tpu_custom_call.1} parent=1 // pred_check_branch
      %62 = sbr.rel (0) target = $region37
    $region36: #{tpu_custom_call.1} parent=1 // pred_region
      %63 = dma.done [#allocation7], 256
    $region37: #{tpu_custom_call.1} parent=1 // pred_fallthru
      _
    // Predicated region
    $region38: #{tpu_custom_call.1} parent=1 // pred_check
      _
    $region39: #{tpu_custom_call.1} parent=1 // pred_check_branch
      %65 = sbr.rel (0) target = $region41
    $region40: #{tpu_custom_call.1} parent=1 // pred_region
      %66 = dma.done [#allocation7], 512
    $region41: #{tpu_custom_call.1} parent=1 // pred_fallthru
      _
    %v68 = vld [vmem:[#allocation3] sm:$0xff]
    %v69 = vpack.c.bf16 %v68, %v68
    %v70 = vld [vmem:[#allocation6] sm:$0xf]
    %v71 = vld [vmem:[#allocation6 + $0x4] sm:$0xf]
    %v72 = vld [vmem:[#allocation6 + $0x8] sm:$0xf]
    %v73 = vld [vmem:[#allocation6 + $0xc] sm:$0xf]
    %v74 = vld [vmem:[%s2] sm:$0x1]
    %v76 = vlaneseq
    %v77 = vshrl.u32 %v76, 7
    %v78 = vsub.s32 0, %v77
    %v79 = vrot.slane %v74, %v78
    %v85 = vunpack.c.l.b16 %v70
    %v86 = vunpack.c.l.b16 %v71
    %v87 = vunpack.c.l.b16 %v72
    %v88 = vunpack.c.l.b16 %v73
    %v89 = vpack.c.b16 %v86, %v85
    %v90 = vpack.c.b16 %v88, %v87
    %vm93 = vcmask 261120
    %v95 = vsel %vm93, %v69, 0
    %97 = vmatprep.subr.bf16.mxu0 0
    %98 = vmatpush1.bf16.msra.mxu0 0
    %99 = vmatprep.subr.bf16.mxu0 0
    %100 = vmatpush1.bf16.msra.mxu0 0
    %101 = vmatprep.subr.bf16.mxu0 0
    %102 = vmatpush1.bf16.msra.mxu0 0
    %103 = vmatprep.subr.bf16.mxu0 0
    %104 = vmatpush1.bf16.msra.mxu0 0
    %105 = vmatprep.subr.bf16.mxu0 0
    %106 = vmatpush1.bf16.msra.mxu0 0
    %107 = vmatprep.subr.bf16.mxu0 0
    %108 = vmatpush1.bf16.msra.mxu0 0
    %109 = vmatprep.subr.bf16.mxu0 0
    %110 = vmatpush1.bf16.msra.mxu0 %v90
    %111 = vmatprep.subr.bf16.mxu0 0
    %112 = vmatpush1.bf16.msra.mxu0 %v89
    %113 = vmatprep.subr.bf16.mxu0 0
    %114 = vmatpush2.bf16.msra.mxu0 0
    %115 = vmatprep.subr.bf16.mxu0 0
    %116 = vmatpush2.bf16.msra.mxu0 0
    %117 = vmatprep.subr.bf16.mxu0 0
    %118 = vmatpush2.bf16.msra.mxu0 0
    %119 = vmatprep.subr.bf16.mxu0 0
    %120 = vmatpush2.bf16.msra.mxu0 0
    %121 = vmatprep.subr.bf16.mxu0 0
    %122 = vmatpush2.bf16.msra.mxu0 0
    %123 = vmatprep.subr.bf16.mxu0 0
    %124 = vmatpush2.bf16.msra.mxu0 0
    %125 = vmatprep.subr.bf16.mxu0 0
    %126 = vmatpush2.bf16.msra.mxu0 0
    %127 = vmatprep.subr.bf16.mxu0 0
    %128 = vmatpush2.bf16.msra.mxu0 0
    %129 = vmatprep.mubr.bf16.mxu0 0
    %130 = vmatmul.mubr.bf16.gmra.mxu0 %v95
    %v131 = vpop.f32.mrf.mxu0
    %v132 = vadd.f32 %v79, %v131
    %v133 = vpop.f32.mrf.mxu0
    %v134 = vpop.f32.mrf.mxu0
    %v135 = vpop.f32.mrf.mxu0
    %136 = vdwg.mxu0
    %v137 = vtanh.pop %v132
    %v138 = vpack.c.bf16 %v137, %v137
    %v139 = vld [vmem:[#allocation8] sm:$0xf]
    %v140 = vld [vmem:[#allocation8 + $0x4] sm:$0xf]
    %v141 = vld [vmem:[#allocation8 + $0x8] sm:$0xf]
    %v142 = vld [vmem:[#allocation8 + $0xc] sm:$0xf]
    %v143 = vld [vmem:[#allocation8 + $0x10] sm:$0xf]
    %v144 = vld [vmem:[#allocation8 + $0x14] sm:$0xf]
    %v145 = vld [vmem:[#allocation8 + $0x18] sm:$0xf]
    %v146 = vld [vmem:[#allocation8 + $0x1c] sm:$0xf]
    %v147 = vld [vmem:[%s4] sm:$0x1]
    %v149 = vlaneseq
    %v150 = vshrl.u32 %v149, 7
    %v151 = vsub.s32 0, %v150
    %v152 = vrot.slane %v147, %v151
    %v162 = vunpack.c.l.b16 %v139
    %v163 = vunpack.c.l.b16 %v140
    %v164 = vunpack.c.l.b16 %v141
    %v165 = vunpack.c.l.b16 %v142
    %v166 = vunpack.c.l.b16 %v143
    %v167 = vunpack.c.l.b16 %v144
    %v168 = vunpack.c.l.b16 %v145
    %v169 = vunpack.c.l.b16 %v146
    %v170 = vpack.c.b16 %v163, %v162
    %v171 = vpack.c.b16 %v165, %v164
    %v172 = vpack.c.b16 %v167, %v166
    %v173 = vpack.c.b16 %v169, %v168
    %vm178 = vcmask 523264
    %v180 = vsel %vm178, %v138, 0
    %182 = vmatprep.subr.bf16.mxu0 0
    %183 = vmatpush1.bf16.msra.mxu0 0
    %184 = vmatprep.subr.bf16.mxu0 0
    %185 = vmatpush1.bf16.msra.mxu0 0
    %186 = vmatprep.subr.bf16.mxu0 0
    %187 = vmatpush1.bf16.msra.mxu0 0
    %188 = vmatprep.subr.bf16.mxu0 0
    %189 = vmatpush1.bf16.msra.mxu0 0
    %190 = vmatprep.subr.bf16.mxu0 0
    %191 = vmatpush1.bf16.msra.mxu0 %v173
    %192 = vmatprep.subr.bf16.mxu0 0
    %193 = vmatpush1.bf16.msra.mxu0 %v172
    %194 = vmatprep.subr.bf16.mxu0 0
    %195 = vmatpush1.bf16.msra.mxu0 %v171
    %196 = vmatprep.subr.bf16.mxu0 0
    %197 = vmatpush1.bf16.msra.mxu0 %v170
    %198 = vmatprep.subr.bf16.mxu0 0
    %199 = vmatpush2.bf16.msra.mxu0 0
    %200 = vmatprep.subr.bf16.mxu0 0
    %201 = vmatpush2.bf16.msra.mxu0 0
    %202 = vmatprep.subr.bf16.mxu0 0
    %203 = vmatpush2.bf16.msra.mxu0 0
    %204 = vmatprep.subr.bf16.mxu0 0
    %205 = vmatpush2.bf16.msra.mxu0 0
    %206 = vmatprep.subr.bf16.mxu0 0
    %207 = vmatpush2.bf16.msra.mxu0 0
    %208 = vmatprep.subr.bf16.mxu0 0
    %209 = vmatpush2.bf16.msra.mxu0 0
    %210 = vmatprep.subr.bf16.mxu0 0
    %211 = vmatpush2.bf16.msra.mxu0 0
    %212 = vmatprep.subr.bf16.mxu0 0
    %213 = vmatpush2.bf16.msra.mxu0 0
    %214 = vmatprep.mubr.bf16.mxu0 0
    %215 = vmatmul.mubr.bf16.gmra.mxu0 %v180
    %v216 = vpop.f32.mrf.mxu0
    %v217 = vadd.f32 %v152, %v216
    %v218 = vpop.f32.mrf.mxu0
    %v219 = vpop.f32.mrf.mxu0
    %v220 = vpop.f32.mrf.mxu0
    %221 = vdwg.mxu0
    %v222 = vtanh.pop %v217
    %v223 = vld [vmem:[%s5] sm:$0xff]
    %v225 = vsel %vm178, %v223, 0
    %v228 = vsel %vm178, %v222, 0
    %230 = vmatprep.subr.mxu0 0.0
    %231 = vmatpush1.xpose.msra.mxu0 0.0
    %232 = vmatprep.subr.mxu0 0.0
    %233 = vmatpush1.xpose.msra.mxu0 0.0
    %234 = vmatprep.subr.mxu0 0.0
    %235 = vmatpush1.xpose.msra.mxu0 0.0
    %236 = vmatprep.subr.mxu0 0.0
    %237 = vmatpush1.xpose.msra.mxu0 0.0
    %238 = vmatprep.subr.mxu0 0.0
    %239 = vmatpush1.xpose.msra.mxu0 0.0
    %240 = vmatprep.subr.mxu0 0.0
    %241 = vmatpush1.xpose.msra.mxu0 0.0
    %242 = vmatprep.subr.mxu0 0.0
    %243 = vmatpush1.xpose.msra.mxu0 0.0
    %244 = vmatprep.subr.mxu0 0.0
    %245 = vmatpush1.xpose.msra.mxu0 0.0
    %246 = vmatprep.subr.mxu0 0.0
    %247 = vmatpush1.xpose.msra.mxu0 0.0
    %248 = vmatprep.subr.mxu0 0.0
    %249 = vmatpush1.xpose.msra.mxu0 0.0
    %250 = vmatprep.subr.mxu0 0.0
    %251 = vmatpush1.xpose.msra.mxu0 0.0
    %252 = vmatprep.subr.mxu0 0.0
    %253 = vmatpush1.xpose.msra.mxu0 0.0
    %254 = vmatprep.subr.mxu0 0.0
    %255 = vmatpush1.xpose.msra.mxu0 0.0
    %256 = vmatprep.subr.mxu0 0.0
    %257 = vmatpush1.xpose.msra.mxu0 0.0
    %258 = vmatprep.subr.mxu0 0.0
    %259 = vmatpush1.xpose.msra.mxu0 0.0
    %260 = vmatprep.subr.mxu0 0.0
    %261 = vmatpush1.xpose.msra.mxu0 %v228
    %262 = vmatprep.subr.mxu0 0.0
    %263 = vmatpush2.xpose.msra.mxu0 0.0
    %264 = vmatprep.subr.mxu0 0.0
    %265 = vmatpush2.xpose.msra.mxu0 0.0
    %266 = vmatprep.subr.mxu0 0.0
    %267 = vmatpush2.xpose.msra.mxu0 0.0
    %268 = vmatprep.subr.mxu0 0.0
    %269 = vmatpush2.xpose.msra.mxu0 0.0
    %270 = vmatprep.subr.mxu0 0.0
    %271 = vmatpush2.xpose.msra.mxu0 0.0
    %272 = vmatprep.subr.mxu0 0.0
    %273 = vmatpush2.xpose.msra.mxu0 0.0
    %274 = vmatprep.subr.mxu0 0.0
    %275 = vmatpush2.xpose.msra.mxu0 0.0
    %276 = vmatprep.subr.mxu0 0.0
    %277 = vmatpush2.xpose.msra.mxu0 0.0
    %278 = vmatprep.subr.mxu0 0.0
    %279 = vmatpush2.xpose.msra.mxu0 0.0
    %280 = vmatprep.subr.mxu0 0.0
    %281 = vmatpush2.xpose.msra.mxu0 0.0
    %282 = vmatprep.subr.mxu0 0.0
    %283 = vmatpush2.xpose.msra.mxu0 0.0
    %284 = vmatprep.subr.mxu0 0.0
    %285 = vmatpush2.xpose.msra.mxu0 0.0
    %286 = vmatprep.subr.mxu0 0.0
    %287 = vmatpush2.xpose.msra.mxu0 0.0
    %288 = vmatprep.subr.mxu0 0.0
    %289 = vmatpush2.xpose.msra.mxu0 0.0
    %290 = vmatprep.subr.mxu0 0.0
    %291 = vmatpush2.xpose.msra.mxu0 0.0
    %292 = vmatprep.subr.mxu0 0.0
    %293 = vmatpush2.xpose.msra.mxu0 0.0
    %294 = vmatprep.mubr.f32.mxu0 0.0
    %295 = vmatmul.mubr.f32.gmra.mxu0 %v225
    %v296 = vpop.f32.mrf.mxu0
    %v297 = vadd.f32 0.0, %v296
    %v298 = vpop.f32.mrf.mxu0
    %299 = vdwg.mxu0
    %s300 = sld [smem:[#allocation2]]
    %v301 = vstv %s300
    %v302 = vadd.f32 %v297, %v301
    %vm303 = vcmask 57344
    %304 = vst.msk [vmem:[#allocation9] sm:$0x1] %vm303, %v302
    // Predicated region
    $region42: #{tpu_custom_call.1} parent=1 // pred_check
      _
    $region43: #{tpu_custom_call.1} parent=1 // pred_check_branch
      %306 = sbr.rel (0) target = $region45
    $region44: #{tpu_custom_call.1} parent=1 // pred_region
      %s308 = ssub.s32 16, 16
      %309 = vsyncadd [#allocation5], %s308
      %s311 = sshll.u32 [#allocation9], 4
      %s312 = int_to_ptr.vmem [resolvable:$true] %s311
      %314 = dma.vmem_to_hbm [thread:$0]  %s312, 16, %s7, [#allocation5]
    $region45: #{tpu_custom_call.1} parent=1 // pred_fallthru
      _
    // Predicated region
    $region46: #{tpu_custom_call.1} parent=1 // pred_check
      _
    $region47: #{tpu_custom_call.1} parent=1 // pred_check_branch
      %316 = sbr.rel (0) target = $region49
    $region48: #{tpu_custom_call.1} parent=1 // pred_region
      %317 = dma.done [#allocation5], 16
    $region49: #{tpu_custom_call.1} parent=1 // pred_fallthru
      _
    %318 = vsyncpa [#allocation4], 1
    %319 = vsyncpa [#allocation7], 1
    %320 = vsyncpa [#allocation5], 1

</llo_original>
